<compile_context>
chip_gen: v5e
topology: v5e:2x2
jax: 0.10.0
libtpu: 0.0.40
codegen_flags: <defaults>
</compile_context>

<pallas_src>
import functools

import jax
import jax.numpy as jnp
from jax.experimental import pallas as pl
from jax.experimental.pallas import tpu as pltpu

_CLAMP_MIN = 1e-6


def _round_up(v, m):
    return -(-v // m) * m


def _cdiv(a, b):
    return -(-a // b)


def _sublane_granularity(dtype):
    return {4: 8, 2: 16, 1: 32}.get(jnp.dtype(dtype).itemsize, 8)


def _vmem_capacity_bytes():
    try:
        cap = getattr(pltpu.get_tpu_info(), "vmem_capacity_bytes", None)
        if cap:
            return int(cap)
    except Exception:
        pass
    return 64 * 1024 * 1024   # conservative default (v7x per-TC physical VMEM)


def _avgpool_clamp_kernel(x_ref, o_ref, acc_ref, *, inv_hw, hw, thw,
                          mask_last_hw_block):
    """x_ref: (brows, thw) input tile; o_ref / acc_ref: (brows, 1)."""
    k = pl.program_id(1)

    @pl.when(k == 0)
    def _init():
        acc_ref[...] = jnp.zeros_like(acc_ref)

    # Accumulate in f32 regardless of input dtype (bf16 mean over H*W loses bits).
    x = x_ref[...].astype(jnp.float32)
    x = jnp.maximum(x, _CLAMP_MIN)              # torch clamp(min=1e-6)
    if mask_last_hw_block:
        # Ragged last H*W block: zero (do NOT clamp) the out-of-range lanes so the
        # padding contributes nothing to the sum.
        lane = jax.lax.broadcasted_iota(jnp.int32, x.shape, 1)
        x = jnp.where(k * thw + lane < hw, x, 0.0)
    acc_ref[...] += jnp.sum(x, axis=1, keepdims=True)   # rows stay on sublanes

    @pl.when(k == pl.num_programs(1) - 1)
    def _finalize():
        # Multiply by baked 1/HW instead of a vector divide.
        o_ref[...] = (acc_ref[...] * inv_hw).astype(o_ref.dtype)


def avg_pool_2d(x, *, block_budget_bytes=None):
    """x: (N, C, H, W) -> (N, C) mean over H*W of clamp(x, min=1e-6)."""
    N, C, H, W = x.shape
    R = N * C
    HW = H * W
    x2d = x.reshape(R, HW)                      # free row-major reshape, stays in HBM
    itemsize = jnp.dtype(x.dtype).itemsize
    sub = _sublane_granularity(x.dtype)

    # ---- generation-aware per-block budget (double-buffered by the pipeline).
    vmem_cap = _vmem_capacity_bytes()
    if block_budget_bytes is None:
        block_budget_bytes = min(max(vmem_cap // 4, 4 * 1024 * 1024), 16 * 1024 * 1024)
    budget = max(int(block_budget_bytes), sub * 128 * itemsize)
    budget = min(budget, max(sub * 128 * itemsize, (vmem_cap - (8 << 20)) // 2))

    # ---- spatial (lane) tile: full H*W if it fits (one contiguous slab per row),
    #      else a 128-multiple with a masked ragged last block.
    if _round_up(HW, 128) * sub * itemsize <= budget:
        thw = HW
    else:
        thw = max(128, (budget // (sub * itemsize)) // 128 * 128)
    k_blocks = _cdiv(HW, thw)
    mask_last = (HW % thw) != 0
    thw_pad = _round_up(thw, 128)

    # ---- row (sublane) tile over N*C.
    max_rows = max(sub, (budget // (thw_pad * itemsize)) // sub * sub)
    if R <= max_rows:
        brows = R
        if R > sub:
            # Guarantee >=2 row blocks so the "parallel" axis can shard across the
            # two v7x TensorCores (harmless extra grid step on 1-TC chips).
            brows = _round_up(_cdiv(R, 2), sub)
        # (If R <= sub the rows can't legally be split; splitting H*W with an
        #  epilogue combine would be the next step but isn't worth it here.)
    else:
        brows = max_rows
    r_blocks = _cdiv(R, brows)

    grid = (r_blocks, k_blocks)

    # ---- VMEM budget: dtype-aware sublane rounding; double-buffered in/out + acc.
    in_buf = _round_up(brows, sub) * thw_pad * itemsize
    out_buf = _round_up(brows, 8) * 128 * itemsize
    acc_buf = _round_up(brows, 8) * 128 * 4
    vmem_limit = 2 * in_buf + 2 * out_buf + acc_buf + (2 << 20)
    vmem_limit = min(max(vmem_limit, 24 << 20), vmem_cap)

    kernel = functools.partial(
        _avgpool_clamp_kernel,
        inv_hw=1.0 / HW, hw=HW, thw=thw, mask_last_hw_block=mask_last)

    out = pl.pallas_call(
        kernel,
        out_shape=jax.ShapeDtypeStruct((R, 1), x.dtype),
        grid_spec=pltpu.PrefetchScalarGridSpec(
            num_scalar_prefetch=0,
            grid=grid,
            in_specs=[pl.BlockSpec((brows, thw), lambda r, k: (r, k))],
            out_specs=pl.BlockSpec((brows, 1), lambda r, k: (r, 0)),
            scratch_shapes=[pltpu.VMEM((brows, 1), jnp.float32)],
        ),
        compiler_params=pltpu.CompilerParams(
            dimension_semantics=("parallel", "arbitrary"),
            vmem_limit_bytes=int(vmem_limit),
        ),
    )(x2d)
    return out.reshape(N, C)


if __name__ == "__main__":
    key = jax.random.PRNGKey(0)

    # 1) Small shape consistent with the module (N, C, H, W), default (big-block) path.
    N, C, H, W = 2, 4, 16, 16
    x = jax.random.normal(key, (N, C, H, W), dtype=jnp.float32)
    out = avg_pool_2d(x)
    jax.block_until_ready(out)
    ref = jnp.mean(jnp.maximum(x.reshape(N, C, H * W), 1e-6), axis=2)
    assert out.shape == (N, C)
    assert jnp.allclose(out, ref, atol=1e-6, rtol=1e-6)

    # 2) Tiny block budget -> multi-step reduction with a ragged (masked) last H*W
    #    block and a partial last row block (R = 10 rows, brows = 8).
    N2, C2, H2, W2 = 2, 5, 40, 40
    x2 = jax.random.normal(jax.random.PRNGKey(0), (N2, C2, H2, W2), dtype=jnp.float32)
    out2 = avg_pool_2d(x2, block_budget_bytes=16 * 1024)
    jax.block_until_ready(out2)
    ref2 = jnp.mean(jnp.maximum(x2.reshape(N2, C2, H2 * W2), 1e-6), axis=2)
    assert out2.shape == (N2, C2)
    assert jnp.allclose(out2, ref2, atol=1e-6, rtol=1e-5)

    # 3) Forced >=2 parallel row blocks (R = 16 > sublane granularity), HW < 128.
    N3, C3, H3, W3 = 2, 8, 8, 8
    x3 = jax.random.normal(jax.random.PRNGKey(0), (N3, C3, H3, W3), dtype=jnp.float32)
    out3 = avg_pool_2d(x3)
    jax.block_until_ready(out3)
    ref3 = jnp.mean(jnp.maximum(x3.reshape(N3, C3, H3 * W3), 1e-6), axis=2)
    assert out3.shape == (N3, C3)
    assert jnp.allclose(out3, ref3, atol=1e-6, rtol=1e-5)

    # 4) bf16 input (dtype-aware sublane accounting; f32 accumulation in-kernel).
    x_bf = x.astype(jnp.bfloat16)
    out_bf = avg_pool_2d(x_bf)
    jax.block_until_ready(out_bf)
    ref_bf = jnp.mean(jnp.maximum(x_bf.astype(jnp.float32).reshape(N, C, H * W), 1e-6),
                      axis=2)
    assert out_bf.shape == (N, C)
    assert jnp.allclose(out_bf.astype(jnp.float32), ref_bf, atol=1e-2, rtol=1e-2)

    print("KERNEL_OK")
</pallas_src>

<mosaic_0001>
module attributes {stable_mosaic.version = 11 : i64} {
  func.func @_avgpool_clamp_kernel(%arg0: i32, %arg1: i32, %arg2: memref<8x256xf32, #tpu.memory_space<vmem>>, %arg3: memref<8x1xf32, #tpu.memory_space<vmem>>, %arg4: memref<8x1xf32, #tpu.memory_space<vmem>>) attributes {dimension_semantics = [#tpu.dimension_semantics<parallel>, #tpu.dimension_semantics<arbitrary>], iteration_bounds = array<i64: 1, 1>, scalar_prefetch = 0 : i64, scratch_operands = 1 : i64, tpu.core_type = #tpu.core_type<tc>, window_params = [{transform_indices = @transform_0, window_bounds = array<i64: 8, 256>}, {transform_indices = @transform_1, window_bounds = array<i64: 8, 1>}]} {
    %c0_i32 = arith.constant 0 : i32
    %0 = arith.cmpi eq, %arg1, %c0_i32 : i32
    %1 = arith.extui %0 : i1 to i32
    %c0_i32_0 = arith.constant 0 : i32
    %2 = arith.cmpi ne, %1, %c0_i32_0 : i32
    scf.if %2 {
      %cst_9 = arith.constant 0.000000e+00 : f32
      %14 = vector.broadcast %cst_9 : f32 to vector<8x1xf32>
      %c0_10 = arith.constant 0 : index
      %c0_11 = arith.constant 0 : index
      %15 = vector.load %arg4[%c0_10, %c0_11] : memref<8x1xf32, #tpu.memory_space<vmem>>, vector<8x1xf32>
      tpu.vector_store %arg4[%c0_10, %c0_11], %14 {strides = array<i32>} : memref<8x1xf32, #tpu.memory_space<vmem>>, vector<8x1xf32>,
    } else {
    }
    %c0 = arith.constant 0 : index
    %c0_1 = arith.constant 0 : index
    %3 = vector.load %arg2[%c0, %c0_1] : memref<8x256xf32, #tpu.memory_space<vmem>>, vector<8x256xf32>
    %cst = arith.constant 9.99999997E-7 : f32
    %4 = vector.broadcast %cst : f32 to vector<8x256xf32>
    %5 = arith.maximumf %3, %4 : vector<8x256xf32>
    %c0_2 = arith.constant 0 : index
    %c0_3 = arith.constant 0 : index
    %6 = vector.load %arg4[%c0_2, %c0_3] : memref<8x1xf32, #tpu.memory_space<vmem>>, vector<8x1xf32>
    %cst_4 = arith.constant dense<0.000000e+00> : vector<8xf32>
    %7 = vector.multi_reduction <add>, %5, %cst_4 [1] : vector<8x256xf32> to vector<8xf32>
    %8 = vector.shape_cast %7 : vector<8xf32> to vector<8x1xf32>
    %9 = arith.addf %6, %8 : vector<8x1xf32>
    %c0_5 = arith.constant 0 : index
    %c0_6 = arith.constant 0 : index
    %10 = vector.load %arg4[%c0_5, %c0_6] : memref<8x1xf32, #tpu.memory_space<vmem>>, vector<8x1xf32>
    tpu.vector_store %arg4[%c0_5, %c0_6], %9 {strides = array<i32>} : memref<8x1xf32, #tpu.memory_space<vmem>>, vector<8x1xf32>,
    %c0_i32_7 = arith.constant 0 : i32
    %11 = arith.cmpi eq, %arg1, %c0_i32_7 : i32
    %12 = arith.extui %11 : i1 to i32
    %c0_i32_8 = arith.constant 0 : i32
    %13 = arith.cmpi ne, %12, %c0_i32_8 : i32
    scf.if %13 {
      %c0_9 = arith.constant 0 : index
      %c0_10 = arith.constant 0 : index
      %14 = vector.load %arg4[%c0_9, %c0_10] : memref<8x1xf32, #tpu.memory_space<vmem>>, vector<8x1xf32>
      %cst_11 = arith.constant 3.906250e-03 : f32
      %15 = vector.broadcast %cst_11 : f32 to vector<8x1xf32>
      %16 = arith.mulf %14, %15 : vector<8x1xf32>
      %c0_12 = arith.constant 0 : index
      %c0_13 = arith.constant 0 : index
      %17 = vector.load %arg3[%c0_12, %c0_13] : memref<8x1xf32, #tpu.memory_space<vmem>>, vector<8x1xf32>
      tpu.vector_store %arg3[%c0_12, %c0_13], %16 {strides = array<i32>} : memref<8x1xf32, #tpu.memory_space<vmem>>, vector<8x1xf32>,
    } else {
    }
    return
  }
  func.func @transform_0(%arg0: i32, %arg1: i32) -> (i32, i32) {
    %c0_i32 = arith.constant 0 : i32
    return %arg0, %arg1 : i32, i32
  }
  func.func @transform_1(%arg0: i32, %arg1: i32) -> (i32, i32) {
    %c0_i32 = arith.constant 0 : i32
    %c0_i32_0 = arith.constant 0 : i32
    return %arg0, %c0_i32 : i32, i32
  }
}

</mosaic_0001>

<llo_original>
// kernel: tpu_custom_call.1
$region0: #{tpu_custom_call.1}
  #allocation0 [shape = 'u32[]', space=smem, size = 0x4, offset = 0x4, fixed_abs, tag = 'smem constant byte address 0x4 - core index']
  #allocation1 [shape = 'u32[72,128]{1,0:T(1,128)}', space=vmem, size = 0x9000, scoped, tag = 'internal scratch']
  #allocation2 [shape = 'f32[8,1]{1,0:T(8,128)}', space=vmem, size = 0x1000, scoped, tag = 'scratch operand']
  %s0 = inlined_call_operand.hbm [shape: f32[8,256], index: 0, kind: input, shape index: {}]
  %s1 = inlined_call_operand.vmem [shape: f32[8,1], index: 1, kind: output, shape index: {}]
  %s2 = sld [smem:[#allocation0]]
  $region26: #{tpu_custom_call.1} parent=0
    _
  %s4 = ssub.s32 1, %s2
  %s5 = scalar_select 0, %s4, %s2
  $region1: #{tpu_custom_call.1} parent=0
    #allocation3 [shape = 'u8[8192]{0}', space=vmem, size = 0x2000, scoped, tag = 'input window, operand 0, single buffered']
    #allocation4 [shape = 's32[1]{0}', space=sflag, size = 0x4, scoped, tag = 'scoped memory for tpu_custom_call.1']
    %6 = vsyncpa [#allocation4], 0
    // Predicated region
    $region2: #{tpu_custom_call.1} parent=1 // pred_check
      _
    $region3: #{tpu_custom_call.1} parent=1 // pred_check_branch
      %8 = sbr.rel (0) target = $region5
    $region4: #{tpu_custom_call.1} parent=1 // pred_region
      %10 = vsyncadd [#allocation4], 0
      %s12 = sshll.u32 %s0, 4
      %s13 = int_to_ptr.hbm [resolvable:$true] %s12
      %s14 = sshll.u32 [#allocation3], 4
      %s15 = int_to_ptr.vmem [resolvable:$true] %s14
      %17 = dma.hbm_to_vmem [thread:$0]  %s13, 256, %s15, [#allocation4]
    $region5: #{tpu_custom_call.1} parent=1 // pred_fallthru
      _
    // Predicated region
    $region6: #{tpu_custom_call.1} parent=1 // pred_check
      _
    $region7: #{tpu_custom_call.1} parent=1 // pred_check_branch
      %19 = sbr.rel (0) target = $region9
    $region8: #{tpu_custom_call.1} parent=1 // pred_region
      %21 = dma.done [#allocation4], 256
    $region9: #{tpu_custom_call.1} parent=1 // pred_fallthru
      _
    %p22 = scmp.eq.s32.totalorder 0, 0
    // Predicated region
    $region10: #{tpu_custom_call.1} parent=1 // pred_check
      %p23 = pneg %p22
    $region11: #{tpu_custom_call.1} parent=1 // pred_check_branch
      %25 = sbr.rel (%p23) target = $region13
    $region12: #{tpu_custom_call.1} parent=1 // pred_region
      %vm26 = vcmask 7168
      %27 = vst.msk [vmem:[#allocation2] sm:$0xff] %vm26, 0.0
    $region13: #{tpu_custom_call.1} parent=1 // pred_fallthru
      _
    %v28 = vld [vmem:[#allocation3] sm:$0xff]
    %v29 = vld [vmem:[#allocation3 + $0x8] sm:$0xff]
    %v30 = vmax.f32 %v28, 1e-06
    %v31 = vmax.f32 %v29, 1e-06
    %v32 = vld [vmem:[#allocation2] sm:$0xff]
    %v33 = vadd.f32 %v30, %v31
    %34 = vadd.xlane.f32.xlu0 %v33
    %v35 = vpop.xlane.xlu0 %34
    %v36 = vadd.f32 %v32, %v35
    %vm37 = vcmask 7168
    %38 = vst.msk [vmem:[#allocation2] sm:$0xff] %vm37, %v36
    // Predicated region
    $region14: #{tpu_custom_call.1} parent=1 // pred_check
      %p39 = pneg %p22
    $region15: #{tpu_custom_call.1} parent=1 // pred_check_branch
      %41 = sbr.rel (%p39) target = $region17
    $region16: #{tpu_custom_call.1} parent=1 // pred_region
      %v42 = vld [vmem:[#allocation2] sm:$0xff]
      %v43 = vmul.f32 %v42, 0.00390625
      %44 = vst.msk [vmem:[%s1] sm:$0xff] %vm37, %v43
    $region17: #{tpu_custom_call.1} parent=1 // pred_fallthru
      _
    // Predicated region
    $region18: #{tpu_custom_call.1} parent=1 // pred_check
      _
    $region19: #{tpu_custom_call.1} parent=1 // pred_check_branch
      %46 = sbr.rel (0) target = $region21
    $region20: #{tpu_custom_call.1} parent=1 // pred_region
      _
    $region21: #{tpu_custom_call.1} parent=1 // pred_fallthru
      _
    // Predicated region
    $region22: #{tpu_custom_call.1} parent=1 // pred_check
      _
    $region23: #{tpu_custom_call.1} parent=1 // pred_check_branch
      %48 = sbr.rel (0) target = $region25
    $region24: #{tpu_custom_call.1} parent=1 // pred_region
      _
    $region25: #{tpu_custom_call.1} parent=1 // pred_fallthru
      _
    %49 = vsyncpa [#allocation4], 1

</llo_original>
